<compile_context>
chip_gen: v5e
topology: v5e:2x2
jax: 0.10.0
libtpu: 0.0.40
codegen_flags: <defaults>
</compile_context>

<pallas_src>
import functools
import math

import jax
import jax.numpy as jnp
from jax.experimental import pallas as pl
from jax.experimental.pallas import tpu as pltpu

_LANE = 128
_MAX_TILE_ROWS = 1024          # (1024, 128) f32 tile = 512 KiB/stream; 3 streams
                               # double-buffered ~= 3 MiB << 32 MiB scoped VMEM.
_HALF_LOG_2PI = 0.5 * math.log(2.0 * math.pi)


def _round_up(x, m):
    return ((x + m - 1) // m) * m


# ----------------------------------------------------------------------------
# Fused Normal(mean, std).log_prob kernel.
#   lp = -(x - mean)^2 / (2*std^2) - log(std) - 0.5*log(2*pi)
# Constants are baked in as Python floats (std is fixed at module construction).
# ----------------------------------------------------------------------------
def _log_prob_kernel(mean_ref, x_ref, out_ref, *, neg_inv_two_var, log_norm):
    # Subtract in the native dtype, upcast only the single difference to f32.
    diff = (x_ref[...] - mean_ref[...]).astype(jnp.float32)
    lp = diff * diff * neg_inv_two_var - log_norm
    out_ref[...] = lp.astype(out_ref.dtype)


def _log_prob(action_mean, actions, std):
    assert action_mean.shape == actions.shape
    orig_shape = action_mean.shape
    dtype = action_mean.dtype

    n = action_mean.size
    # Lane-dense layout: flatten, pad to an (8,128)-aligned (rows, 128) slab.
    rows = _round_up(pl.cdiv(n, _LANE), 8)
    tile_rows = min(_MAX_TILE_ROWS, rows)
    rows = _round_up(rows, tile_rows)
    padded = rows * _LANE

    mean_flat = jnp.pad(action_mean.reshape(-1), (0, padded - n)).reshape(rows, _LANE)
    act_flat = jnp.pad(actions.reshape(-1), (0, padded - n)).reshape(rows, _LANE)

    std_f = float(std)
    kernel = functools.partial(
        _log_prob_kernel,
        neg_inv_two_var=-0.5 / (std_f * std_f),
        log_norm=math.log(std_f) + _HALF_LOG_2PI,
    )

    grid = (rows // tile_rows,)
    block = pl.BlockSpec((tile_rows, _LANE), lambda i: (i, 0))

    lp = pl.pallas_call(
        kernel,
        out_shape=jax.ShapeDtypeStruct((rows, _LANE), dtype),
        grid=grid,
        in_specs=[block, block],
        out_specs=block,
        compiler_params=pltpu.CompilerParams(
            dimension_semantics=("parallel",),
        ),
    )(mean_flat, act_flat)

    return lp.reshape(-1)[:n].reshape(orig_shape)


# ----------------------------------------------------------------------------
# Python-side "distribution" object (glue), mirroring torch FixedNormal usage.
# ----------------------------------------------------------------------------
class FixedNormal:
    def __init__(self, loc, std):
        self.loc = loc          # alias of action_mean — no copy kernel
        self.std = float(std)   # scalar — never materialized as a full array

    @property
    def mean(self):
        return self.loc

    def mode(self):
        return self.loc

    @property
    def scale(self):
        # Only materialized if a caller explicitly asks for the full scale tensor.
        return jnp.full_like(self.loc, self.std)

    def log_prob(self, value):
        return _log_prob(self.loc, value, self.std)

    def sample(self, key):
        eps = jax.random.normal(key, self.loc.shape, dtype=self.loc.dtype)
        return self.loc + self.std * eps


class DiagGaussianFixed:
    """JAX/Pallas equivalent of DiagGaussian_fixed."""

    def __init__(self, std):
        self.std = float(std)

    def __call__(self, action_mean):
        # Forward is a pure passthrough: loc = action_mean, scale = const std.
        # No kernel launch, no HBM traffic (per performance review).
        return FixedNormal(action_mean, self.std)


if __name__ == "__main__":
    key = jax.random.PRNGKey(0)
    batch, action_dim = 2, 32
    k_mean, k_act = jax.random.split(key)
    action_mean = jax.random.normal(k_mean, (batch, action_dim), dtype=jnp.float32)
    actions = jax.random.normal(k_act, (batch, action_dim), dtype=jnp.float32)

    std = 0.5
    dist_head = DiagGaussianFixed(std)
    dist = dist_head(action_mean)

    loc = jax.block_until_ready(dist.loc)
    lp = jax.block_until_ready(dist.log_prob(actions))

    # Reference check in plain JAX (torch.distributions.Normal.log_prob formula).
    ref_lp = (
        -((actions - action_mean) ** 2) / (2.0 * std * std)
        - jnp.log(jnp.float32(std))
        - jnp.float32(_HALF_LOG_2PI)
    )
    assert loc.shape == action_mean.shape
    assert lp.shape == action_mean.shape
    assert jnp.allclose(loc, action_mean, atol=1e-6)
    assert jnp.allclose(dist.scale, jnp.full_like(action_mean, std), atol=1e-6)
    assert jnp.allclose(lp, ref_lp, atol=1e-5, rtol=1e-5)

    print("KERNEL_OK")
</pallas_src>

<mosaic_0001>
module attributes {stable_mosaic.version = 11 : i64} {
  func.func @_log_prob_kernel(%arg0: i32, %arg1: memref<8x128xf32, #tpu.memory_space<vmem>>, %arg2: memref<8x128xf32, #tpu.memory_space<vmem>>, %arg3: memref<8x128xf32, #tpu.memory_space<vmem>>) attributes {dimension_semantics = [#tpu.dimension_semantics<parallel>], iteration_bounds = array<i64: 1>, scalar_prefetch = 0 : i64, scratch_operands = 0 : i64, tpu.core_type = #tpu.core_type<tc>, window_params = [{transform_indices = @transform_0, window_bounds = array<i64: 8, 128>}, {transform_indices = @transform_1, window_bounds = array<i64: 8, 128>}, {transform_indices = @transform_2, window_bounds = array<i64: 8, 128>}]} {
    %c0 = arith.constant 0 : index
    %c0_0 = arith.constant 0 : index
    %0 = vector.load %arg2[%c0, %c0_0] : memref<8x128xf32, #tpu.memory_space<vmem>>, vector<8x128xf32>
    %c0_1 = arith.constant 0 : index
    %c0_2 = arith.constant 0 : index
    %1 = vector.load %arg1[%c0_1, %c0_2] : memref<8x128xf32, #tpu.memory_space<vmem>>, vector<8x128xf32>
    %2 = arith.subf %0, %1 : vector<8x128xf32>
    %3 = arith.mulf %2, %2 : vector<8x128xf32>
    %cst = arith.constant -2.000000e+00 : f32
    %4 = vector.broadcast %cst : f32 to vector<8x128xf32>
    %5 = arith.mulf %3, %4 : vector<8x128xf32>
    %cst_3 = arith.constant 0.22579135 : f32
    %6 = vector.broadcast %cst_3 : f32 to vector<8x128xf32>
    %7 = arith.subf %5, %6 : vector<8x128xf32>
    %c0_4 = arith.constant 0 : index
    %c0_5 = arith.constant 0 : index
    %8 = vector.load %arg3[%c0_4, %c0_5] : memref<8x128xf32, #tpu.memory_space<vmem>>, vector<8x128xf32>
    tpu.vector_store %arg3[%c0_4, %c0_5], %7 {strides = array<i32>} : memref<8x128xf32, #tpu.memory_space<vmem>>, vector<8x128xf32>,
    return
  }
  func.func @transform_0(%arg0: i32) -> (i32, i32) {
    %c0_i32 = arith.constant 0 : i32
    %c0_i32_0 = arith.constant 0 : i32
    return %arg0, %c0_i32 : i32, i32
  }
  func.func @transform_1(%arg0: i32) -> (i32, i32) {
    %c0_i32 = arith.constant 0 : i32
    %c0_i32_0 = arith.constant 0 : i32
    return %arg0, %c0_i32 : i32, i32
  }
  func.func @transform_2(%arg0: i32) -> (i32, i32) {
    %c0_i32 = arith.constant 0 : i32
    %c0_i32_0 = arith.constant 0 : i32
    return %arg0, %c0_i32 : i32, i32
  }
}

</mosaic_0001>

<llo_original>
// kernel: tpu_custom_call.1
$region0: #{tpu_custom_call.1}
  #allocation0 [shape = 'u32[]', space=smem, size = 0x4, offset = 0x4, fixed_abs, tag = 'smem constant byte address 0x4 - core index']
  #allocation1 [shape = 'u32[72,128]{1,0:T(1,128)}', space=vmem, size = 0x9000, scoped, tag = 'internal scratch']
  %s0 = inlined_call_operand.hbm [shape: f32[8,128], index: 0, kind: input, shape index: {}]
  %s1 = inlined_call_operand.hbm [shape: f32[8,128], index: 1, kind: input, shape index: {}]
  %s2 = inlined_call_operand.hbm [shape: f32[8,128], index: 2, kind: output, shape index: {}]
  %s3 = sld [smem:[#allocation0]]
  $region26: #{tpu_custom_call.1} parent=0
    _
  %s5 = ssub.s32 1, %s3
  %s6 = scalar_select 0, %s5, %s3
  $region1: #{tpu_custom_call.1} parent=0
    #allocation2 [shape = 'u8[4096]{0}', space=vmem, size = 0x1000, scoped, tag = 'input window, operand 0, single buffered']
    #allocation3 [shape = 's32[1]{0}', space=sflag, size = 0x4, scoped, tag = 'scoped memory for tpu_custom_call.1']
    #allocation4 [shape = 's32[1]{0}', space=sflag, size = 0x4, scoped, tag = 'scoped memory for tpu_custom_call.1']
    #allocation5 [shape = 'u8[4096]{0}', space=vmem, size = 0x1000, scoped, tag = 'input window, operand 1, single buffered']
    #allocation6 [shape = 's32[1]{0}', space=sflag, size = 0x4, scoped, tag = 'scoped memory for tpu_custom_call.1']
    #allocation7 [shape = 'u8[4096]{0}', space=vmem, size = 0x1000, scoped, tag = 'output window, operand 0, single buffered']
    %7 = vsyncpa [#allocation3], 0
    %8 = vsyncpa [#allocation6], 0
    %9 = vsyncpa [#allocation4], 0
    // Predicated region
    $region2: #{tpu_custom_call.1} parent=1 // pred_check
      _
    $region3: #{tpu_custom_call.1} parent=1 // pred_check_branch
      %11 = sbr.rel (0) target = $region5
    $region4: #{tpu_custom_call.1} parent=1 // pred_region
      %13 = vsyncadd [#allocation3], 0
      %s15 = sshll.u32 %s0, 4
      %s16 = int_to_ptr.hbm [resolvable:$true] %s15
      %s17 = sshll.u32 [#allocation2], 4
      %s18 = int_to_ptr.vmem [resolvable:$true] %s17
      %20 = dma.hbm_to_vmem [thread:$0]  %s16, 128, %s18, [#allocation3]
    $region5: #{tpu_custom_call.1} parent=1 // pred_fallthru
      _
    // Predicated region
    $region6: #{tpu_custom_call.1} parent=1 // pred_check
      _
    $region7: #{tpu_custom_call.1} parent=1 // pred_check_branch
      %22 = sbr.rel (0) target = $region9
    $region8: #{tpu_custom_call.1} parent=1 // pred_region
      %24 = vsyncadd [#allocation6], 0
      %s26 = sshll.u32 %s1, 4
      %s27 = int_to_ptr.hbm [resolvable:$true] %s26
      %s28 = sshll.u32 [#allocation5], 4
      %s29 = int_to_ptr.vmem [resolvable:$true] %s28
      %31 = dma.hbm_to_vmem [thread:$0]  %s27, 128, %s29, [#allocation6]
    $region9: #{tpu_custom_call.1} parent=1 // pred_fallthru
      _
    // Predicated region
    $region10: #{tpu_custom_call.1} parent=1 // pred_check
      _
    $region11: #{tpu_custom_call.1} parent=1 // pred_check_branch
      %33 = sbr.rel (0) target = $region13
    $region12: #{tpu_custom_call.1} parent=1 // pred_region
      %35 = dma.done [#allocation3], 128
    $region13: #{tpu_custom_call.1} parent=1 // pred_fallthru
      _
    // Predicated region
    $region14: #{tpu_custom_call.1} parent=1 // pred_check
      _
    $region15: #{tpu_custom_call.1} parent=1 // pred_check_branch
      %37 = sbr.rel (0) target = $region17
    $region16: #{tpu_custom_call.1} parent=1 // pred_region
      %39 = dma.done [#allocation6], 128
    $region17: #{tpu_custom_call.1} parent=1 // pred_fallthru
      _
    %v40 = vld [vmem:[#allocation5] sm:$0xff]
    %v41 = vld [vmem:[#allocation2] sm:$0xff]
    %v42 = vsub.f32 %v40, %v41
    %v43 = vmul.f32 %v42, %v42
    %v44 = vmul.f32 %v43, -2.0
    %v45 = vsub.f32 %v44, 0.22579135
    %46 = vst [vmem:[#allocation7] sm:$0xff] %v45
    // Predicated region
    $region18: #{tpu_custom_call.1} parent=1 // pred_check
      _
    $region19: #{tpu_custom_call.1} parent=1 // pred_check_branch
      %48 = sbr.rel (0) target = $region21
    $region20: #{tpu_custom_call.1} parent=1 // pred_region
      %50 = vsyncadd [#allocation4], 0
      %s52 = sshll.u32 [#allocation7], 4
      %s53 = int_to_ptr.vmem [resolvable:$true] %s52
      %s54 = sshll.u32 %s2, 4
      %s55 = int_to_ptr.hbm [resolvable:$true] %s54
      %57 = dma.vmem_to_hbm [thread:$0]  %s53, 128, %s55, [#allocation4]
    $region21: #{tpu_custom_call.1} parent=1 // pred_fallthru
      _
    // Predicated region
    $region22: #{tpu_custom_call.1} parent=1 // pred_check
      _
    $region23: #{tpu_custom_call.1} parent=1 // pred_check_branch
      %59 = sbr.rel (0) target = $region25
    $region24: #{tpu_custom_call.1} parent=1 // pred_region
      %61 = dma.done [#allocation4], 128
    $region25: #{tpu_custom_call.1} parent=1 // pred_fallthru
      _
    %62 = vsyncpa [#allocation3], 1
    %63 = vsyncpa [#allocation6], 1
    %64 = vsyncpa [#allocation4], 1

</llo_original>
